<compile_context>
chip_gen: v7x
topology: tpu7x:2x2x1
jax: 0.10.0
libtpu: 0.0.40
codegen_flags: <defaults>
</compile_context>

<pallas_src>
import functools

import jax
import jax.numpy as jnp
from jax.experimental import pallas as pl
from jax.experimental.pallas import tpu as pltpu

_LANES = 128  # vreg lane width


def _round_up(x, m):
    return ((x + m - 1) // m) * m


def _sublane_pack(dtype):
    # Minimum sublane multiple for the dtype's packing: f32->8, bf16->16, i8->32.
    return 8 * max(1, 4 // jnp.dtype(dtype).itemsize)


def _tpu_target():
    """(num_parts, target bytes per input block) for the current TPU generation."""
    try:
        kind = jax.devices()[0].device_kind.lower()
    except Exception:
        kind = ""
    if "v7" in kind:
        # 2 TensorCores/chip, ~3.2 TB/s HBM: larger blocks amortize the
        # ~0.35 us per-grid-step overhead. 4 MiB blocks -> 2 inputs x 2 bufs
        # = 16 MiB, inside the 32 MiB scoped-VMEM default.
        return 2, 4 * 1024 * 1024
    # v5e / v6e: single TensorCore. 2 MiB blocks (8 MiB double-buffered) stay
    # well under v5e's 16 MiB scoped-VMEM default and reach ~86% of roofline.
    return 1, 2 * 1024 * 1024


# ---------------------------------------------------------------------------
# Kernel: per-partition partial sums of |a - b|.
#   grid = (num_parts "parallel", steps "arbitrary"); input blocks are
#   (tile_rows, 128) in the native dtype. The per-partition (8, 128) output
#   block is the accumulator (resident across the steps axis): zero-init at
#   step 0, fold each step's |a-b| into it with a sublane-folded VPU sum.
#   Rows beyond the true row count (ragged last tile / clamped duplicate
#   block) are zeroed with an iota row mask before accumulating.
# ---------------------------------------------------------------------------
def _l1_partial_kernel(a_ref, b_ref, o_ref, *, rows_valid, steps, tile_rows,
                       need_mask):
    p = pl.program_id(0)
    t = pl.program_id(1)

    @pl.when(t == 0)
    def _():
        o_ref[...] = jnp.zeros_like(o_ref)

    d = jnp.abs(a_ref[...].astype(jnp.float32) - b_ref[...].astype(jnp.float32))

    if need_mask:
        row0 = (p * steps + t) * tile_rows
        row = row0 + jax.lax.broadcasted_iota(jnp.int32, (tile_rows, _LANES), 0)
        d = jnp.where(row < rows_valid, d, 0.0)

    # Fold the whole tile into the single-vreg (8, 128) accumulator.
    o_ref[...] += d.reshape(tile_rows // 8, 8, _LANES).sum(axis=0)


# ---------------------------------------------------------------------------
# Wrapper: mean absolute error over all elements of `out` vs `hr`.
# ---------------------------------------------------------------------------
def l1_loss_pallas(out, hr):
    assert out.shape == hr.shape, "L1Loss requires matching shapes"
    n = int(out.size)
    if n == 0:
        return jnp.float32(jnp.nan)  # matches torch.nn.L1Loss on empty input

    a = out.reshape(-1)
    b = hr.reshape(-1)

    num_parts, target_block_bytes = _tpu_target()
    pack = _sublane_pack(a.dtype)
    itemsize = int(jnp.dtype(a.dtype).itemsize)

    rows = pl.cdiv(n, _LANES)
    rem = n % _LANES
    if rem:
        # Rare path (element count not a multiple of 128): pad by < 128 zeros
        # (|0-0| = 0, mean divides by the true n). The common aligned case is
        # a copy-free bitcast reshape.
        a = jnp.pad(a, (0, _LANES - rem))
        b = jnp.pad(b, (0, _LANES - rem))
    a = a.reshape(rows, _LANES)
    b = b.reshape(rows, _LANES)

    if rows < 2 * pack:
        num_parts = 1  # not enough work to shard across TensorCores

    rows_per_part = pl.cdiv(rows, num_parts)
    tile_rows_target = max(pack, target_block_bytes // (_LANES * itemsize))
    # Adaptive: never larger than one partition's (pack-rounded) share, so we
    # never pull in a near-full tile of out-of-range rows.
    tile_rows = min(_round_up(tile_rows_target, pack),
                    _round_up(rows_per_part, pack))
    steps = pl.cdiv(rows_per_part, tile_rows)

    need_mask = (num_parts * steps * tile_rows) != rows
    max_block = pl.cdiv(rows, tile_rows) - 1

    def in_index_map(p, t):
        # Clamp so a (rare) fully-out-of-range step re-reads the last valid
        # block; its contribution is zeroed by the row mask in the kernel.
        return (jnp.minimum(p * steps + t, max_block), 0)

    kernel = functools.partial(
        _l1_partial_kernel,
        rows_valid=rows, steps=steps, tile_rows=tile_rows, need_mask=need_mask)

    partials = pl.pallas_call(
        kernel,
        out_shape=jax.ShapeDtypeStruct((num_parts * 8, _LANES), jnp.float32),
        grid=(num_parts, steps),
        in_specs=[
            pl.BlockSpec((tile_rows, _LANES), in_index_map),
            pl.BlockSpec((tile_rows, _LANES), in_index_map),
        ],
        out_specs=pl.BlockSpec((8, _LANES), lambda p, t: (p, 0)),
        compiler_params=pltpu.CompilerParams(
            dimension_semantics=("parallel", "arbitrary")),
    )(a, b)

    # Tiny (num_parts*8, 128) reduction + 1/N scale: plain XLA, fused for free.
    return jnp.sum(partials) * jnp.float32(1.0 / n)


# Module-style interface matching get_loss.forward(out, HR, degrade_info=None).
def get_loss_forward(out, HR, degrade_info=None):
    del degrade_info  # unused by the reference module
    return l1_loss_pallas(out, HR)


if __name__ == "__main__":
    key = jax.random.PRNGKey(0)
    k1, k2, k3, k4 = jax.random.split(key, 4)

    # SR-style network output / ground truth: [B, C, H, W]
    out = jax.random.normal(k1, (2, 4, 16, 16), jnp.float32)
    hr = jax.random.normal(k2, (2, 4, 16, 16), jnp.float32)
    loss = jax.block_until_ready(get_loss_forward(out, hr))
    ref = jnp.mean(jnp.abs(out - hr))
    assert loss.shape == ()
    assert bool(jnp.isfinite(loss))
    assert abs(float(loss) - float(ref)) < 1e-5 * max(1.0, abs(float(ref)))

    # Non-128-aligned element count: exercises the lane-tail + ragged-tile path.
    out2 = jax.random.normal(k3, (3, 5, 7, 11), jnp.float32)
    hr2 = jax.random.normal(k4, (3, 5, 7, 11), jnp.float32)
    loss2 = jax.block_until_ready(get_loss_forward(out2, hr2))
    ref2 = jnp.mean(jnp.abs(out2 - hr2))
    assert abs(float(loss2) - float(ref2)) < 1e-5 * max(1.0, abs(float(ref2)))

    # bf16 inputs: DMA stays bf16 (half the HBM traffic), accumulate in f32.
    out3 = out.astype(jnp.bfloat16)
    hr3 = hr.astype(jnp.bfloat16)
    loss3 = jax.block_until_ready(get_loss_forward(out3, hr3))
    ref3 = jnp.mean(jnp.abs(out3.astype(jnp.float32) - hr3.astype(jnp.float32)))
    assert abs(float(loss3) - float(ref3)) < 1e-3 * max(1.0, abs(float(ref3)))

    print("KERNEL_OK")
</pallas_src>

<mosaic_0001>
module attributes {stable_mosaic.version = 11 : i64} {
  func.func @_l1_partial_kernel(%arg0: i32, %arg1: i32, %arg2: memref<16x128xf32, #tpu.memory_space<vmem>>, %arg3: memref<16x128xf32, #tpu.memory_space<vmem>>, %arg4: memref<8x128xf32, #tpu.memory_space<vmem>>) attributes {dimension_semantics = [#tpu.dimension_semantics<parallel>, #tpu.dimension_semantics<arbitrary>], iteration_bounds = array<i64: 1, 1>, scalar_prefetch = 0 : i64, scratch_operands = 0 : i64, tpu.core_type = #tpu.core_type<tc>, window_params = [{transform_indices = @transform_0, window_bounds = array<i64: 16, 128>}, {transform_indices = @transform_1, window_bounds = array<i64: 16, 128>}, {transform_indices = @transform_2, window_bounds = array<i64: 8, 128>}]} {
    %c0_i32 = arith.constant 0 : i32
    %0 = arith.cmpi eq, %arg1, %c0_i32 : i32
    %1 = arith.extui %0 : i1 to i32
    %c0_i32_0 = arith.constant 0 : i32
    %2 = arith.cmpi ne, %1, %c0_i32_0 : i32
    scf.if %2 {
      %cst_8 = arith.constant 0.000000e+00 : f32
      %12 = vector.broadcast %cst_8 : f32 to vector<8x128xf32>
      %c0_9 = arith.constant 0 : index
      %c0_10 = arith.constant 0 : index
      %13 = vector.load %arg4[%c0_9, %c0_10] : memref<8x128xf32, #tpu.memory_space<vmem>>, vector<8x128xf32>
      tpu.vector_store %arg4[%c0_9, %c0_10], %12 {strides = array<i32>} : memref<8x128xf32, #tpu.memory_space<vmem>>, vector<8x128xf32>,
    } else {
    }
    %c0 = arith.constant 0 : index
    %c0_1 = arith.constant 0 : index
    %3 = vector.load %arg2[%c0, %c0_1] : memref<16x128xf32, #tpu.memory_space<vmem>>, vector<16x128xf32>
    %c0_2 = arith.constant 0 : index
    %c0_3 = arith.constant 0 : index
    %4 = vector.load %arg3[%c0_2, %c0_3] : memref<16x128xf32, #tpu.memory_space<vmem>>, vector<16x128xf32>
    %5 = arith.subf %3, %4 : vector<16x128xf32>
    %6 = math.absf %5 : vector<16x128xf32>
    %c0_4 = arith.constant 0 : index
    %c0_5 = arith.constant 0 : index
    %7 = vector.load %arg4[%c0_4, %c0_5] : memref<8x128xf32, #tpu.memory_space<vmem>>, vector<8x128xf32>
    %8 = vector.shape_cast %6 : vector<16x128xf32> to vector<2x8x128xf32>
    %cst = arith.constant dense<0.000000e+00> : vector<8x128xf32>
    %9 = vector.multi_reduction <add>, %8, %cst [0] : vector<2x8x128xf32> to vector<8x128xf32>
    %10 = arith.addf %7, %9 : vector<8x128xf32>
    %c0_6 = arith.constant 0 : index
    %c0_7 = arith.constant 0 : index
    %11 = vector.load %arg4[%c0_6, %c0_7] : memref<8x128xf32, #tpu.memory_space<vmem>>, vector<8x128xf32>
    tpu.vector_store %arg4[%c0_6, %c0_7], %10 {strides = array<i32>} : memref<8x128xf32, #tpu.memory_space<vmem>>, vector<8x128xf32>,
    return
  }
  func.func @transform_0(%arg0: i32, %arg1: i32) -> (i32, i32) {
    %c1_i32 = arith.constant 1 : i32
    %0 = arith.muli %arg0, %c1_i32 : i32
    %1 = arith.addi %0, %arg1 : i32
    %c0_i32 = arith.constant 0 : i32
    %2 = arith.minsi %1, %c0_i32 : i32
    %c0_i32_0 = arith.constant 0 : i32
    %c0_i32_1 = arith.constant 0 : i32
    return %2, %c0_i32_0 : i32, i32
  }
  func.func @transform_1(%arg0: i32, %arg1: i32) -> (i32, i32) {
    %c1_i32 = arith.constant 1 : i32
    %0 = arith.muli %arg0, %c1_i32 : i32
    %1 = arith.addi %0, %arg1 : i32
    %c0_i32 = arith.constant 0 : i32
    %2 = arith.minsi %1, %c0_i32 : i32
    %c0_i32_0 = arith.constant 0 : i32
    %c0_i32_1 = arith.constant 0 : i32
    return %2, %c0_i32_0 : i32, i32
  }
  func.func @transform_2(%arg0: i32, %arg1: i32) -> (i32, i32) {
    %c0_i32 = arith.constant 0 : i32
    %c0_i32_0 = arith.constant 0 : i32
    return %arg0, %c0_i32 : i32, i32
  }
}

</mosaic_0001>

<llo_original>
// kernel: tpu_custom_call.1
$region0: #{tpu_custom_call.1}
  #allocation0 [shape = 'u32[]', space=smem, size = 0x4, offset = 0x4, fixed_abs, tag = 'smem constant byte address 0x4 - core index']
  #allocation1 [shape = 'u32[144,128]{1,0:T(1,128)}', space=vmem, size = 0x12000, scoped, tag = 'internal scratch']
  %s0 = inlined_call_operand.hbm [shape: f32[16,128], index: 0, kind: input, shape index: {}]
  %s1 = inlined_call_operand.hbm [shape: f32[16,128], index: 1, kind: input, shape index: {}]
  %s2 = inlined_call_operand.hbm [shape: f32[8,128], index: 2, kind: output, shape index: {}]
  %s3 = sld [smem:[#allocation0]]
  $region30: #{tpu_custom_call.1} parent=0
    _
  %s5 = ssub.s32 1, %s3
  %s6 = scalar_select 0, %s5, %s3
  $region1: #{tpu_custom_call.1} parent=0
    #allocation2 [shape = 'u8[8192]{0}', space=vmem, size = 0x2000, scoped, tag = 'input window, operand 0, single buffered']
    #allocation3 [shape = 's32[1]{0}', space=sflag, size = 0x4, scoped, tag = 'scoped memory for tpu_custom_call.1']
    #allocation4 [shape = 's32[1]{0}', space=sflag, size = 0x4, scoped, tag = 'scoped memory for tpu_custom_call.1']
    #allocation5 [shape = 'u8[8192]{0}', space=vmem, size = 0x2000, scoped, tag = 'input window, operand 1, single buffered']
    #allocation6 [shape = 's32[1]{0}', space=sflag, size = 0x4, scoped, tag = 'scoped memory for tpu_custom_call.1']
    #allocation7 [shape = 'u8[4096]{0}', space=vmem, size = 0x1000, scoped, tag = 'output window, operand 0, single buffered']
    %7 = vsyncpa [#allocation3], 0
    %8 = vsyncpa [#allocation6], 0
    %9 = vsyncpa [#allocation4], 0
    // Predicated region
    $region2: #{tpu_custom_call.1} parent=1 // pred_check
      _
    $region3: #{tpu_custom_call.1} parent=1 // pred_check_branch
      %11 = sbr.rel (0) target = $region5
    $region4: #{tpu_custom_call.1} parent=1 // pred_region
      %s12 = sadd.s32 0, 0
      %p13 = scmp.lt.s32.totalorder %s12, 0
      %s14 = scalar_select %p13, %s12, 0
      %s15 = smul.u32 2, %s14
      %s17 = ssub.s32 256, 256
      %18 = vsyncadd [#allocation3], %s17
      %s19 = smul.addr %s15, 128
      %s20 = scalar_lea.hbm %s0, %s19
      %s21 = sshll.u32 [#allocation2], 4
      %s22 = int_to_ptr.vmem [resolvable:$true] %s21
      %27 = dma.hbm_to_vmem [thread:$0]  %s20, 256, %s22, [#allocation3], 128, 128, 8
    $region5: #{tpu_custom_call.1} parent=1 // pred_fallthru
      _
    // Predicated region
    $region6: #{tpu_custom_call.1} parent=1 // pred_check
      _
    $region7: #{tpu_custom_call.1} parent=1 // pred_check_branch
      %29 = sbr.rel (0) target = $region9
    $region8: #{tpu_custom_call.1} parent=1 // pred_region
      %s30 = sadd.s32 0, 0
      %p31 = scmp.lt.s32.totalorder %s30, 0
      %s32 = scalar_select %p31, %s30, 0
      %s33 = smul.u32 2, %s32
      %s35 = ssub.s32 256, 256
      %36 = vsyncadd [#allocation6], %s35
      %s37 = smul.addr %s33, 128
      %s38 = scalar_lea.hbm %s1, %s37
      %s39 = sshll.u32 [#allocation5], 4
      %s40 = int_to_ptr.vmem [resolvable:$true] %s39
      %45 = dma.hbm_to_vmem [thread:$0]  %s38, 256, %s40, [#allocation6], 128, 128, 8
    $region9: #{tpu_custom_call.1} parent=1 // pred_fallthru
      _
    // Predicated region
    $region10: #{tpu_custom_call.1} parent=1 // pred_check
      _
    $region11: #{tpu_custom_call.1} parent=1 // pred_check_branch
      %47 = sbr.rel (0) target = $region13
    $region12: #{tpu_custom_call.1} parent=1 // pred_region
      %48 = dma.done [#allocation3], 256
    $region13: #{tpu_custom_call.1} parent=1 // pred_fallthru
      _
    // Predicated region
    $region14: #{tpu_custom_call.1} parent=1 // pred_check
      _
    $region15: #{tpu_custom_call.1} parent=1 // pred_check_branch
      %50 = sbr.rel (0) target = $region17
    $region16: #{tpu_custom_call.1} parent=1 // pred_region
      %51 = dma.done [#allocation6], 256
    $region17: #{tpu_custom_call.1} parent=1 // pred_fallthru
      _
    %s52 = sadd.s32 0, 0
    %p53 = scmp.lt.s32.totalorder %s52, 0
    %s54 = scalar_select %p53, %s52, 0
    %s55 = smul.u32 2, %s54
    %s56 = sadd.s32 0, 0
    %p57 = scmp.lt.s32.totalorder %s56, 0
    %s58 = scalar_select %p57, %s56, 0
    %s59 = smul.u32 2, %s58
    %p60 = scmp.eq.s32.totalorder 0, 0
    // Predicated region
    $region18: #{tpu_custom_call.1} parent=1 // pred_check
      %p61 = pneg %p60
    $region19: #{tpu_custom_call.1} parent=1 // pred_check_branch
      %63 = sbr.rel (%p61) target = $region21
    $region20: #{tpu_custom_call.1} parent=1 // pred_region
      %64 = vst [vmem:[#allocation7] sm:$0xff] 0.0
    $region21: #{tpu_custom_call.1} parent=1 // pred_fallthru
      _
    %v65 = vld [vmem:[#allocation2] sm:$0xff]
    %v66 = vld [vmem:[#allocation2 + $0x8] sm:$0xff]
    %v67 = vld [vmem:[#allocation5] sm:$0xff]
    %v68 = vld [vmem:[#allocation5 + $0x8] sm:$0xff]
    %v69 = vsub.f32 %v65, %v67
    %v70 = vsub.f32 %v66, %v68
    %v71 = vand.u32 2147483647, %v69
    %v72 = vand.u32 2147483647, %v70
    %v73 = vld [vmem:[#allocation7] sm:$0xff]
    %v74 = vadd.f32 %v71, %v72
    %v75 = vadd.f32 %v73, %v74
    %76 = vst [vmem:[#allocation7] sm:$0xff] %v75
    // Predicated region
    $region22: #{tpu_custom_call.1} parent=1 // pred_check
      _
    $region23: #{tpu_custom_call.1} parent=1 // pred_check_branch
      %78 = sbr.rel (0) target = $region25
    $region24: #{tpu_custom_call.1} parent=1 // pred_region
      %s80 = ssub.s32 128, 128
      %81 = vsyncadd [#allocation4], %s80
      %s83 = sshll.u32 [#allocation7], 4
      %s84 = int_to_ptr.vmem [resolvable:$true] %s83
      %86 = dma.vmem_to_hbm [thread:$0]  %s84, 128, %s2, [#allocation4]
    $region25: #{tpu_custom_call.1} parent=1 // pred_fallthru
      _
    // Predicated region
    $region26: #{tpu_custom_call.1} parent=1 // pred_check
      _
    $region27: #{tpu_custom_call.1} parent=1 // pred_check_branch
      %88 = sbr.rel (0) target = $region29
    $region28: #{tpu_custom_call.1} parent=1 // pred_region
      %89 = dma.done [#allocation4], 128
    $region29: #{tpu_custom_call.1} parent=1 // pred_fallthru
      _
    %90 = vsyncpa [#allocation3], 1
    %91 = vsyncpa [#allocation6], 1
    %92 = vsyncpa [#allocation4], 1

</llo_original>
